<compile_context>
chip_gen: v6e
topology: v6e:2x2x1
jax: 0.10.0
libtpu: 0.0.40
codegen_flags: <defaults>
</compile_context>

<pallas_src>
import functools

import jax
import jax.numpy as jnp
import numpy as np
from jax.experimental import pallas as pl
from jax.experimental.pallas import tpu as pltpu

TEMP = 0.05  # ProdNameModel.model_args['temp']
_LANE = 128
_SUBLANE = 8


def _round_up(x, m):
    return ((x + m - 1) // m) * m


def choose_tile_n(n_candidates, num_splits=1, max_tile_n=4096):
    """Pick the candidate tile width.  Small tables (production N~1000) get a
    single grid step per split; large tables get big tiles (default 4096 lanes
    = 1 MiB bf16 at D=128) so the ~0.35 us per-grid-step overhead is amortized
    against the HBM-streaming DMA (raise further on v7x)."""
    per_split = -(-n_candidates // num_splits)
    return max(_LANE, min(_round_up(max_tile_n, _LANE),
                          _round_up(per_split, _LANE)))


def prepare_candidate_table(candidate_embeddings, *, tile_n, num_splits=1):
    """One-time prep of the static prodname2emb table:
      * L2-normalize in f32,
      * cast to bf16 (halves HBM bytes streamed per query batch),
      * zero-pad rows to a multiple of num_splits * tile_n,
      * pre-transpose to (D, N_pad) so the kernel uses the canonical
        [B,D] x [D,tile_n] contraction (no per-tile transpose).
    Returns (table_T bf16 [D, N_pad], n_valid)."""
    n, _ = candidate_embeddings.shape
    c = candidate_embeddings.astype(jnp.float32)
    c = c / jnp.maximum(jnp.linalg.norm(c, axis=-1, keepdims=True), 1e-12)
    pad_to = num_splits * tile_n
    n_pad = _round_up(n, pad_to)
    c = jnp.pad(c, ((0, n_pad - n), (0, 0))).astype(jnp.bfloat16)
    return c.T, n


def prepare_queries(cls_embeddings):
    """L2-normalize, fold in the 1/temp scale, cast to bf16 (native MXU input)
    and pad the batch to a multiple of 8 so every (B, tile_n) result vreg is
    fully used.  Returns (q_padded [B_pad, D] bf16, B)."""
    b, _ = cls_embeddings.shape
    q = cls_embeddings.astype(jnp.float32)
    q = q / jnp.maximum(jnp.linalg.norm(q, axis=-1, keepdims=True), 1e-12)
    q = (q * (1.0 / TEMP)).astype(jnp.bfloat16)
    b_pad = _round_up(b, _SUBLANE)
    return jnp.pad(q, ((0, b_pad - b), (0, 0))), b


def _make_sim_argmax_kernel(*, n_valid, tile_n, tiles_per_split, emit_sim):
    """Kernel factory.  Grid = (num_splits, tiles_per_split).

    q_ref   : (B_pad, D)      queries, normalized, pre-scaled by 1/temp, bf16
    c_ref   : (D, TN)         one tile of the pre-transposed bf16 table
    sim_ref : (B_pad, TN)     similarity tile (only when emit_sim)
    mx_ref  : (1, B_pad, 1)   per-split max   (written on last tile)
    idx_ref : (1, B_pad, 1)   per-split argmax (global candidate index)
    run_max / run_idx : (B_pad, TN) VMEM scratch accumulators.
    """
    NEG_INF = float("-inf")                 # Python scalars only -> no
    BIG = int(np.iinfo(np.int32).max)       # captured-constant lowering error.

    def kernel(q_ref, c_ref, *refs):
        if emit_sim:
            sim_ref, mx_ref, idx_ref, run_max_ref, run_idx_ref = refs
        else:
            mx_ref, idx_ref, run_max_ref, run_idx_ref = refs

        h = pl.program_id(0)    # candidate split (parallel across TensorCores)
        j = pl.program_id(1)    # tile within split (sequential reduction)

        # bf16 [B, D] @ bf16 [D, TN] -> f32 [B, TN] on the MXU.
        dots = jnp.dot(q_ref[...], c_ref[...],
                       preferred_element_type=jnp.float32)

        tile_idx = h * tiles_per_split + j
        lane = jax.lax.broadcasted_iota(jnp.int32, dots.shape, 1)
        gcol = lane + tile_idx * tile_n          # global candidate index
        # Mask zero-padded columns so padding can never win the argmax.
        sim = jnp.where(gcol < n_valid, dots, NEG_INF)

        if emit_sim:
            sim_ref[...] = sim

        # Deferred argmax: per-tile updates are elementwise (VPU) selects into
        # running accumulators; cross-lane (XLU) reduction happens once per
        # split on the last tile.
        @pl.when(j == 0)
        def _():
            run_max_ref[...] = sim
            run_idx_ref[...] = gcol

        @pl.when(j > 0)
        def _():
            upd = sim > run_max_ref[...]   # strict '>' keeps earlier tile on ties
            run_idx_ref[...] = jnp.where(upd, gcol, run_idx_ref[...])
            run_max_ref[...] = jnp.where(upd, sim, run_max_ref[...])

        @pl.when(j == pl.num_programs(1) - 1)
        def _():
            rm = run_max_ref[...]
            ri = run_idx_ref[...]
            best = jnp.max(rm, axis=-1, keepdims=True)                 # (B, 1)
            # First occurrence on ties: smallest global index among maxima
            # (gcol is monotone in global candidate index).
            arg = jnp.min(jnp.where(rm == best, ri, BIG),
                          axis=-1, keepdims=True)                      # (B, 1)
            mx_ref[0] = best
            idx_ref[0] = arg

    return kernel


@functools.partial(
    jax.jit, static_argnames=("n_valid", "tile_n", "num_splits", "return_sim"))
def prodname_similarity_argmax(q_padded, candidate_table_t, *, n_valid,
                               tile_n, num_splits=1, return_sim=False):
    """Similarity + argmax of ProdNameModel.get_similarity for a padded query
    batch.  Returns (sim [B_pad, N_pad] f32 or None, argmax_idx [B_pad] i32)."""
    b_pad, d = q_padded.shape
    d2, n_pad = candidate_table_t.shape
    assert d == d2 and n_pad % (num_splits * tile_n) == 0
    tiles_per_split = n_pad // (num_splits * tile_n)

    kernel = _make_sim_argmax_kernel(
        n_valid=n_valid, tile_n=tile_n, tiles_per_split=tiles_per_split,
        emit_sim=return_sim)

    out_shape = []
    out_specs = []
    if return_sim:
        out_shape.append(jax.ShapeDtypeStruct((b_pad, n_pad), jnp.float32))
        out_specs.append(pl.BlockSpec(
            (b_pad, tile_n), lambda h, j: (0, h * tiles_per_split + j)))
    # Per-split max / argmax; output blocks are written once, on the last tile
    # of each split (their block index is constant across the j axis).
    out_shape.append(jax.ShapeDtypeStruct((num_splits, b_pad, 1), jnp.float32))
    out_specs.append(pl.BlockSpec((1, b_pad, 1), lambda h, j: (h, 0, 0)))
    out_shape.append(jax.ShapeDtypeStruct((num_splits, b_pad, 1), jnp.int32))
    out_specs.append(pl.BlockSpec((1, b_pad, 1), lambda h, j: (h, 0, 0)))

    # Rough VMEM footprint; only raise the scoped limit when a large tile
    # sweep actually needs it (default scoped VMEM: 16 MiB v5e, 32 MiB
    # v6e/v7x; all static Python ints, resolved at trace time).
    est = (2 * d * tile_n * 2                                 # dbl-buf bf16 tile
           + (2 * b_pad * tile_n * 4 if return_sim else 0)    # sim writeback
           + b_pad * tile_n * 8                               # run_max/run_idx
           + 2 * b_pad * d * 2)                               # resident queries
    compiler_kwargs = dict(dimension_semantics=("parallel", "arbitrary"))
    if est > 12 * 1024 * 1024:
        compiler_kwargs["vmem_limit_bytes"] = min(2 * est, 100 * 1024 * 1024)

    outs = pl.pallas_call(
        kernel,
        out_shape=tuple(out_shape),
        grid_spec=pltpu.PrefetchScalarGridSpec(
            num_scalar_prefetch=0,
            grid=(num_splits, tiles_per_split),
            in_specs=[
                pl.BlockSpec((b_pad, d), lambda h, j: (0, 0)),   # resident q
                pl.BlockSpec((d, tile_n),
                             lambda h, j: (0, h * tiles_per_split + j)),
            ],
            out_specs=tuple(out_specs),
            scratch_shapes=[
                pltpu.VMEM((b_pad, tile_n), jnp.float32),   # running max
                pltpu.VMEM((b_pad, tile_n), jnp.int32),     # running argmax
            ]),
        compiler_params=pltpu.CompilerParams(**compiler_kwargs),
    )(q_padded, candidate_table_t)

    if return_sim:
        sim_pad, mx, idx = outs
    else:
        mx, idx = outs
        sim_pad = None

    mx = mx[..., 0].T     # (B_pad, num_splits)
    idx = idx[..., 0].T   # (B_pad, num_splits); entries are global indices
    # Split 0 always holds the smallest global indices and jnp.argmax breaks
    # ties toward the lowest split -> first-occurrence semantics match
    # torch.argmax.  A split that is entirely padding reports max=-inf and
    # can never win against a finite split.
    best_split = jnp.argmax(mx, axis=1)
    argmax_idx = jnp.take_along_axis(idx, best_split[:, None], axis=1)[:, 0]
    return sim_pad, argmax_idx


def prodname_model_forward_get_emb(cls_embeddings, candidate_embeddings, *,
                                   tile_n=None, num_splits=1,
                                   max_tile_n=4096, return_sim=False):
    """Pallas equivalent of ProdNameModel.forward_get_emb for a batch of query
    CLS embeddings: similarity + argmax in the kernel; gathering the winning
    (original, un-normalized) candidate embedding is plain-JAX glue.
    num_splits=1 for single-TensorCore chips (v5e/v6e); 2 on v7x."""
    # TODO(synk): tokenizer / Electra encoder / StringMatchingModel / DVC dict
    # loading have no clean Pallas equivalent; cls_embeddings stands in for
    # model_outputs.pooler_output and candidate_embeddings for the stacked
    # prodname2emb rows of the sampled candidate set.
    n = candidate_embeddings.shape[0]
    if tile_n is None:
        tile_n = choose_tile_n(n, num_splits=num_splits, max_tile_n=max_tile_n)
    table_t, n_valid = prepare_candidate_table(
        candidate_embeddings, tile_n=tile_n, num_splits=num_splits)
    q_padded, b = prepare_queries(cls_embeddings)
    sim_pad, idx_pad = prodname_similarity_argmax(
        q_padded, table_t, n_valid=n_valid, tile_n=tile_n,
        num_splits=num_splits, return_sim=return_sim)
    idx = idx_pad[:b]
    sim = sim_pad[:b, :n_valid] if return_sim else None
    final_embs = jnp.take(candidate_embeddings, idx, axis=0)   # glue: gather
    return final_embs, sim, idx


if __name__ == "__main__":
    # B queries, N candidate product names (module samples k=1000), D hidden.
    B, N, D = 2, 1000, 128
    key = jax.random.PRNGKey(0)
    k_q, k_c = jax.random.split(key)
    cls_embeddings = jax.random.normal(k_q, (B, D), dtype=jnp.float32)
    candidate_embeddings = jax.random.normal(k_c, (N, D), dtype=jnp.float32)

    # Pure-JAX reference on the SAME bf16-quantized normalized inputs the
    # kernel consumes (bf16 x bf16 -> f32, matching the MXU path).  Note the
    # bf16 quantization itself can in principle flip near-tied argmax results
    # vs the f32 PyTorch reference.
    table_t_ref, n_valid_ref = prepare_candidate_table(
        candidate_embeddings, tile_n=choose_tile_n(N), num_splits=1)
    q_ref, _ = prepare_queries(cls_embeddings)
    sim_ref = jnp.dot(q_ref[:B], table_t_ref[:, :n_valid_ref],
                      preferred_element_type=jnp.float32)
    idx_ref = jnp.argmax(sim_ref, axis=1).astype(jnp.int32)

    # Case 1: production-size path -- whole table covered in one grid step
    # (num_splits=1, auto tile_n), sim matrix materialized.
    final_embs, sim, idx = prodname_model_forward_get_emb(
        cls_embeddings, candidate_embeddings, num_splits=1, return_sim=True)
    jax.block_until_ready((final_embs, sim, idx))
    assert sim.shape == (B, N)
    assert jnp.allclose(sim, sim_ref, rtol=1e-3, atol=1e-2), (
        float(jnp.max(jnp.abs(sim - sim_ref))))
    assert jnp.array_equal(idx, idx_ref)
    assert jnp.array_equal(final_embs, candidate_embeddings[idx_ref])

    # Case 2: small forced tile + 2-way split (exercises the deferred-argmax
    # accumulators and the cross-split merge; production sweeps use tiles of
    # 2048-16384 instead).
    final2, sim2, idx2 = prodname_model_forward_get_emb(
        cls_embeddings, candidate_embeddings,
        tile_n=128, num_splits=2, return_sim=True)
    jax.block_until_ready((final2, sim2, idx2))
    assert jnp.allclose(sim2, sim_ref, rtol=1e-3, atol=1e-2)
    assert jnp.array_equal(idx2, idx_ref)
    assert jnp.array_equal(final2, candidate_embeddings[idx_ref])

    # Case 3: fast path used by forward_get_emb proper (no sim writeback).
    final3, sim3, idx3 = prodname_model_forward_get_emb(
        cls_embeddings, candidate_embeddings,
        tile_n=128, num_splits=2, return_sim=False)
    jax.block_until_ready((final3, idx3))
    assert sim3 is None
    assert jnp.array_equal(idx3, idx_ref)
    assert jnp.array_equal(final3, candidate_embeddings[idx_ref])

    print("KERNEL_OK")
</pallas_src>

<mosaic_0001>
module attributes {stable_mosaic.version = 11 : i64} {
  func.func @kernel(%arg0: i32, %arg1: i32, %arg2: memref<8x128xbf16, #tpu.memory_space<vmem>>, %arg3: memref<128x1024xbf16, #tpu.memory_space<vmem>>, %arg4: memref<8x1024xf32, #tpu.memory_space<vmem>>, %arg5: memref<1x8x1xf32, #tpu.memory_space<vmem>>, %arg6: memref<1x8x1xi32, #tpu.memory_space<vmem>>, %arg7: memref<8x1024xf32, #tpu.memory_space<vmem>>, %arg8: memref<8x1024xi32, #tpu.memory_space<vmem>>) attributes {dimension_semantics = [#tpu.dimension_semantics<parallel>, #tpu.dimension_semantics<arbitrary>], iteration_bounds = array<i64: 1, 1>, scalar_prefetch = 0 : i64, scratch_operands = 2 : i64, tpu.core_type = #tpu.core_type<tc>, window_params = [{pipeline_mode = #tpu.pipeline_mode<synchronous>, transform_indices = @transform_0, window_bounds = array<i64: 8, 128>}, {transform_indices = @transform_1, window_bounds = array<i64: 128, 1024>}, {transform_indices = @transform_2, window_bounds = array<i64: 8, 1024>}, {transform_indices = @transform_3, window_bounds = array<i64: 1, 8, 1>}, {transform_indices = @transform_4, window_bounds = array<i64: 1, 8, 1>}]} {
    %c0 = arith.constant 0 : index
    %c0_0 = arith.constant 0 : index
    %0 = vector.load %arg2[%c0, %c0_0] : memref<8x128xbf16, #tpu.memory_space<vmem>>, vector<8x128xbf16>
    %c0_1 = arith.constant 0 : index
    %c0_2 = arith.constant 0 : index
    %1 = vector.load %arg3[%c0_1, %c0_2] : memref<128x1024xbf16, #tpu.memory_space<vmem>>, vector<128x1024xbf16>
    %cst = arith.constant dense<0.000000e+00> : vector<8x1024xf32>
    %2 = tpu.matmul %0, %1, %cst {dimension_numbers = #tpu.dot_dimension_numbers<[1], [0], [0], [1], [0, 0, 1, 1], [], []>} : vector<8x128xbf16>, vector<128x1024xbf16>, vector<8x1024xf32> -> vector<8x1024xf32>
    %c1_i32 = arith.constant 1 : i32
    %3 = arith.muli %arg0, %c1_i32 : i32
    %4 = arith.addi %3, %arg1 : i32
    %5 = tpu.iota {dimensions = array<i32: 1>} : vector<8x1024xi32>
    %c1024_i32 = arith.constant 1024 : i32
    %6 = arith.muli %4, %c1024_i32 : i32
    %7 = vector.broadcast %6 : i32 to vector<8x1024xi32>
    %8 = arith.addi %5, %7 : vector<8x1024xi32>
    %c1000_i32 = arith.constant 1000 : i32
    %9 = vector.broadcast %c1000_i32 : i32 to vector<8x1024xi32>
    %10 = arith.cmpi slt, %8, %9 : vector<8x1024xi32>
    %cst_3 = arith.constant 0xFF800000 : f32
    %11 = vector.broadcast %cst_3 : f32 to vector<8x1024xf32>
    %12 = arith.select %10, %2, %11 : vector<8x1024xi1>, vector<8x1024xf32>
    %c0_4 = arith.constant 0 : index
    %c0_5 = arith.constant 0 : index
    %13 = vector.load %arg4[%c0_4, %c0_5] : memref<8x1024xf32, #tpu.memory_space<vmem>>, vector<8x1024xf32>
    tpu.vector_store %arg4[%c0_4, %c0_5], %12 {strides = array<i32>} : memref<8x1024xf32, #tpu.memory_space<vmem>>, vector<8x1024xf32>,
    %c0_i32 = arith.constant 0 : i32
    %14 = arith.cmpi eq, %arg1, %c0_i32 : i32
    %15 = arith.extui %14 : i1 to i32
    %c0_i32_6 = arith.constant 0 : i32
    %16 = arith.cmpi ne, %15, %c0_i32_6 : i32
    scf.if %16 {
      %c0_11 = arith.constant 0 : index
      %c0_12 = arith.constant 0 : index
      %23 = vector.load %arg7[%c0_11, %c0_12] : memref<8x1024xf32, #tpu.memory_space<vmem>>, vector<8x1024xf32>
      tpu.vector_store %arg7[%c0_11, %c0_12], %12 {strides = array<i32>} : memref<8x1024xf32, #tpu.memory_space<vmem>>, vector<8x1024xf32>,
      %c0_13 = arith.constant 0 : index
      %c0_14 = arith.constant 0 : index
      %24 = vector.load %arg8[%c0_13, %c0_14] : memref<8x1024xi32, #tpu.memory_space<vmem>>, vector<8x1024xi32>
      tpu.vector_store %arg8[%c0_13, %c0_14], %8 {strides = array<i32>} : memref<8x1024xi32, #tpu.memory_space<vmem>>, vector<8x1024xi32>,
    } else {
    }
    %c0_i32_7 = arith.constant 0 : i32
    %17 = arith.cmpi sgt, %arg1, %c0_i32_7 : i32
    %18 = arith.extui %17 : i1 to i32
    %c0_i32_8 = arith.constant 0 : i32
    %19 = arith.cmpi ne, %18, %c0_i32_8 : i32
    scf.if %19 {
      %c0_11 = arith.constant 0 : index
      %c0_12 = arith.constant 0 : index
      %23 = vector.load %arg7[%c0_11, %c0_12] : memref<8x1024xf32, #tpu.memory_space<vmem>>, vector<8x1024xf32>
      %24 = arith.cmpf ogt, %12, %23 : vector<8x1024xf32>
      %c0_13 = arith.constant 0 : index
      %c0_14 = arith.constant 0 : index
      %25 = vector.load %arg8[%c0_13, %c0_14] : memref<8x1024xi32, #tpu.memory_space<vmem>>, vector<8x1024xi32>
      %26 = arith.select %24, %8, %25 : vector<8x1024xi1>, vector<8x1024xi32>
      %c0_15 = arith.constant 0 : index
      %c0_16 = arith.constant 0 : index
      %27 = vector.load %arg8[%c0_15, %c0_16] : memref<8x1024xi32, #tpu.memory_space<vmem>>, vector<8x1024xi32>
      tpu.vector_store %arg8[%c0_15, %c0_16], %26 {strides = array<i32>} : memref<8x1024xi32, #tpu.memory_space<vmem>>, vector<8x1024xi32>,
      %c0_17 = arith.constant 0 : index
      %c0_18 = arith.constant 0 : index
      %28 = vector.load %arg7[%c0_17, %c0_18] : memref<8x1024xf32, #tpu.memory_space<vmem>>, vector<8x1024xf32>
      %29 = arith.select %24, %12, %28 : vector<8x1024xi1>, vector<8x1024xf32>
      %c0_19 = arith.constant 0 : index
      %c0_20 = arith.constant 0 : index
      %30 = vector.load %arg7[%c0_19, %c0_20] : memref<8x1024xf32, #tpu.memory_space<vmem>>, vector<8x1024xf32>
      tpu.vector_store %arg7[%c0_19, %c0_20], %29 {strides = array<i32>} : memref<8x1024xf32, #tpu.memory_space<vmem>>, vector<8x1024xf32>,
    } else {
    }
    %c0_i32_9 = arith.constant 0 : i32
    %20 = arith.cmpi eq, %arg1, %c0_i32_9 : i32
    %21 = arith.extui %20 : i1 to i32
    %c0_i32_10 = arith.constant 0 : i32
    %22 = arith.cmpi ne, %21, %c0_i32_10 : i32
    scf.if %22 {
      %c0_11 = arith.constant 0 : index
      %c0_12 = arith.constant 0 : index
      %23 = vector.load %arg7[%c0_11, %c0_12] : memref<8x1024xf32, #tpu.memory_space<vmem>>, vector<8x1024xf32>
      %c0_13 = arith.constant 0 : index
      %c0_14 = arith.constant 0 : index
      %24 = vector.load %arg8[%c0_13, %c0_14] : memref<8x1024xi32, #tpu.memory_space<vmem>>, vector<8x1024xi32>
      %cst_15 = arith.constant dense<0xFF800000> : vector<8xf32>
      %25 = vector.multi_reduction <maximumf>, %23, %cst_15 [1] : vector<8x1024xf32> to vector<8xf32>
      %26 = vector.shape_cast %25 : vector<8xf32> to vector<8x1xf32>
      %27 = vector.broadcast %26 : vector<8x1xf32> to vector<8x1024xf32>
      %28 = arith.cmpf oeq, %23, %27 : vector<8x1024xf32>
      %c2147483647_i32 = arith.constant 2147483647 : i32
      %29 = vector.broadcast %c2147483647_i32 : i32 to vector<8x1024xi32>
      %30 = arith.select %28, %24, %29 : vector<8x1024xi1>, vector<8x1024xi32>
      %cst_16 = arith.constant dense<2147483647> : vector<8xi32>
      %31 = vector.multi_reduction <minsi>, %30, %cst_16 [1] : vector<8x1024xi32> to vector<8xi32>
      %32 = vector.shape_cast %31 : vector<8xi32> to vector<8x1xi32>
      %c0_17 = arith.constant 0 : index
      %c0_18 = arith.constant 0 : index
      %c0_19 = arith.constant 0 : index
      %33 = vector.load %arg5[%c0_17, %c0_18, %c0_19] : memref<1x8x1xf32, #tpu.memory_space<vmem>>, vector<1x8x1xf32>
      %34 = vector.shape_cast %33 : vector<1x8x1xf32> to vector<8x1xf32>
      %35 = vector.shape_cast %26 : vector<8x1xf32> to vector<1x8x1xf32>
      tpu.vector_store %arg5[%c0_17, %c0_18, %c0_19], %35 {strides = array<i32>} : memref<1x8x1xf32, #tpu.memory_space<vmem>>, vector<1x8x1xf32>,
      %c0_20 = arith.constant 0 : index
      %c0_21 = arith.constant 0 : index
      %c0_22 = arith.constant 0 : index
      %36 = vector.load %arg6[%c0_20, %c0_21, %c0_22] : memref<1x8x1xi32, #tpu.memory_space<vmem>>, vector<1x8x1xi32>
      %37 = vector.shape_cast %36 : vector<1x8x1xi32> to vector<8x1xi32>
      %38 = vector.shape_cast %32 : vector<8x1xi32> to vector<1x8x1xi32>
      tpu.vector_store %arg6[%c0_20, %c0_21, %c0_22], %38 {strides = array<i32>} : memref<1x8x1xi32, #tpu.memory_space<vmem>>, vector<1x8x1xi32>,
    } else {
    }
    return
  }
  func.func @transform_0(%arg0: i32, %arg1: i32) -> (i32, i32) {
    %c0_i32 = arith.constant 0 : i32
    %c0_i32_0 = arith.constant 0 : i32
    %c0_i32_1 = arith.constant 0 : i32
    return %c0_i32, %c0_i32_0 : i32, i32
  }
  func.func @transform_1(%arg0: i32, %arg1: i32) -> (i32, i32) {
    %c1_i32 = arith.constant 1 : i32
    %0 = arith.muli %arg0, %c1_i32 : i32
    %1 = arith.addi %0, %arg1 : i32
    %c0_i32 = arith.constant 0 : i32
    %c0_i32_0 = arith.constant 0 : i32
    return %c0_i32, %1 : i32, i32
  }
  func.func @transform_2(%arg0: i32, %arg1: i32) -> (i32, i32) {
    %c1_i32 = arith.constant 1 : i32
    %0 = arith.muli %arg0, %c1_i32 : i32
    %1 = arith.addi %0, %arg1 : i32
    %c0_i32 = arith.constant 0 : i32
    %c0_i32_0 = arith.constant 0 : i32
    return %c0_i32, %1 : i32, i32
  }
  func.func @transform_3(%arg0: i32, %arg1: i32) -> (i32, i32, i32) {
    %c0_i32 = arith.constant 0 : i32
    %c0_i32_0 = arith.constant 0 : i32
    %c0_i32_1 = arith.constant 0 : i32
    return %arg0, %c0_i32, %c0_i32_0 : i32, i32, i32
  }
  func.func @transform_4(%arg0: i32, %arg1: i32) -> (i32, i32, i32) {
    %c0_i32 = arith.constant 0 : i32
    %c0_i32_0 = arith.constant 0 : i32
    %c0_i32_1 = arith.constant 0 : i32
    return %arg0, %c0_i32, %c0_i32_0 : i32, i32, i32
  }
}

</mosaic_0001>

<llo_original>
// kernel: prodname_similarity_argmax.1
$region0: #{prodname_similarity_argmax.1}
  #allocation0 [shape = 'u32[]', space=smem, size = 0x4, offset = 0x4, fixed_abs, tag = 'smem constant byte address 0x4 - core index']
  #allocation1 [shape = 'u32[144,128]{1,0:T(1,128)}', space=vmem, size = 0x12000, scoped, tag = 'internal scratch']
  #allocation2 [shape = 'f32[8,1024]{1,0:T(8,128)}', space=vmem, size = 0x8000, scoped, tag = 'scratch operand']
  #allocation3 [shape = 's32[8,1024]{1,0:T(8,128)}', space=vmem, size = 0x8000, scoped, tag = 'scratch operand']
  %s0 = inlined_call_operand.hbm [shape: bf16[8,128], index: 0, kind: input, shape index: {}]
  %s1 = inlined_call_operand.hbm [shape: bf16[128,1024], index: 1, kind: input, shape index: {}]
  %s2 = inlined_call_operand.hbm [shape: f32[8,1024], index: 2, kind: output, shape index: {0}]
  %s3 = inlined_call_operand.hbm [shape: f32[1,8,1], index: 3, kind: output, shape index: {1}]
  %s4 = inlined_call_operand.vmem [shape: s32[1,8,1], index: 4, kind: output, shape index: {2}]
  %5 = xla_tuple %s2, %s3, %s4
  %s6 = sld [smem:[#allocation0]]
  $region54: #{prodname_similarity_argmax.1} parent=0
    _
  %s8 = ssub.s32 1, %s6
  %s9 = scalar_select 0, %s8, %s6
  $region1: #{prodname_similarity_argmax.1} parent=0
    #allocation4 [shape = 'u8[2048]{0}', space=vmem, size = 0x800, scoped, tag = 'input window, operand 0, single buffered']
    #allocation5 [shape = 's32[1]{0}', space=sflag, size = 0x4, scoped, tag = 'scoped memory for prodname_similarity_argmax.1']
    #allocation6 [shape = 's32[1]{0}', space=sflag, size = 0x4, scoped, tag = 'scoped memory for prodname_similarity_argmax.1']
    #allocation7 [shape = 'u8[262144]{0}', space=vmem, size = 0x40000, scoped, tag = 'input window, operand 1, single buffered']
    #allocation8 [shape = 's32[1]{0}', space=sflag, size = 0x4, scoped, tag = 'scoped memory for prodname_similarity_argmax.1']
    #allocation9 [shape = 'u8[32768]{0}', space=vmem, size = 0x8000, scoped, tag = 'output window, operand 0, single buffered']
    #allocation10 [shape = 'u8[4096]{0}', space=vmem, size = 0x1000, scoped, tag = 'output window, operand 1, single buffered']
    #allocation11 [shape = 's32[1]{0}', space=sflag, size = 0x4, scoped, tag = 'scoped memory for prodname_similarity_argmax.1']
    %10 = vsyncpa [#allocation5], 0
    %11 = vsyncpa [#allocation8], 0
    %12 = vsyncpa [#allocation6], 0
    %13 = vsyncpa [#allocation11], 0
    // Predicated region
    $region2: #{prodname_similarity_argmax.1} parent=1 // pred_check
      _
    $region3: #{prodname_similarity_argmax.1} parent=1 // pred_check_branch
      %15 = sbr.rel (0) target = $region5
    $region4: #{prodname_similarity_argmax.1} parent=1 // pred_region
      %s17 = ssub.s32 64, 64
      %18 = vsyncadd [#allocation5], %s17
      %s20 = sshll.u32 [#allocation4], 4
      %s21 = int_to_ptr.vmem [resolvable:$true] %s20
      %23 = dma.hbm_to_vmem [thread:$0]  %s0, 64, %s21, [#allocation5]
    $region5: #{prodname_similarity_argmax.1} parent=1 // pred_fallthru
      _
    // Predicated region
    $region6: #{prodname_similarity_argmax.1} parent=1 // pred_check
      _
    $region7: #{prodname_similarity_argmax.1} parent=1 // pred_check_branch
      %25 = sbr.rel (0) target = $region9
    $region8: #{prodname_similarity_argmax.1} parent=1 // pred_region
      %s26 = sadd.s32 0, 0
      %s27 = smul.u32 8, %s26
      %s29 = ssub.s32 8192, 8192
      %30 = vsyncadd [#allocation8], %s29
      %s31 = smul.addr %s27, 64
      %s32 = scalar_lea.hbm %s1, %s31
      %s33 = sshll.u32 [#allocation7], 4
      %s34 = int_to_ptr.vmem [resolvable:$true] %s33
      %39 = dma.hbm_to_vmem [thread:$0]  %s32, 8192, %s34, [#allocation8], 512, 512, 32
    $region9: #{prodname_similarity_argmax.1} parent=1 // pred_fallthru
      _
    // Predicated region
    $region10: #{prodname_similarity_argmax.1} parent=1 // pred_check
      _
    $region11: #{prodname_similarity_argmax.1} parent=1 // pred_check_branch
      %41 = sbr.rel (0) target = $region13
    $region12: #{prodname_similarity_argmax.1} parent=1 // pred_region
      %42 = dma.done [#allocation5], 64
    $region13: #{prodname_similarity_argmax.1} parent=1 // pred_fallthru
      _
    // Predicated region
    $region14: #{prodname_similarity_argmax.1} parent=1 // pred_check
      _
    $region15: #{prodname_similarity_argmax.1} parent=1 // pred_check_branch
      %44 = sbr.rel (0) target = $region17
    $region16: #{prodname_similarity_argmax.1} parent=1 // pred_region
      %45 = dma.done [#allocation8], 8192
    $region17: #{prodname_similarity_argmax.1} parent=1 // pred_fallthru
      _
    %s46 = sadd.s32 0, 0
    %s47 = smul.u32 8, %s46
    %s48 = sadd.s32 0, 0
    %s49 = smul.u32 8, %s48
    %v51 = vld [vmem:[#allocation4] sm:$0xf]
    %v52 = vld [vmem:[#allocation7] sm:$0xff]
    %v53 = vld [vmem:[#allocation7 + $0x8] sm:$0xff]
    %v54 = vld [vmem:[#allocation7 + $0x10] sm:$0xff]
    %v55 = vld [vmem:[#allocation7 + $0x18] sm:$0xff]
    %v56 = vld [vmem:[#allocation7 + $0x20] sm:$0xff]
    %v57 = vld [vmem:[#allocation7 + $0x28] sm:$0xff]
    %v58 = vld [vmem:[#allocation7 + $0x30] sm:$0xff]
    %v59 = vld [vmem:[#allocation7 + $0x38] sm:$0xff]
    %v60 = vld [vmem:[#allocation7 + $0x40] sm:$0xff]
    %v61 = vld [vmem:[#allocation7 + $0x48] sm:$0xff]
    %v62 = vld [vmem:[#allocation7 + $0x50] sm:$0xff]
    %v63 = vld [vmem:[#allocation7 + $0x58] sm:$0xff]
    %v64 = vld [vmem:[#allocation7 + $0x60] sm:$0xff]
    %v65 = vld [vmem:[#allocation7 + $0x68] sm:$0xff]
    %v66 = vld [vmem:[#allocation7 + $0x70] sm:$0xff]
    %v67 = vld [vmem:[#allocation7 + $0x78] sm:$0xff]
    %v68 = vld [vmem:[#allocation7 + $0x80] sm:$0xff]
    %v69 = vld [vmem:[#allocation7 + $0x88] sm:$0xff]
    %v70 = vld [vmem:[#allocation7 + $0x90] sm:$0xff]
    %v71 = vld [vmem:[#allocation7 + $0x98] sm:$0xff]
    %v72 = vld [vmem:[#allocation7 + $0xa0] sm:$0xff]
    %v73 = vld [vmem:[#allocation7 + $0xa8] sm:$0xff]
    %v74 = vld [vmem:[#allocation7 + $0xb0] sm:$0xff]
    %v75 = vld [vmem:[#allocation7 + $0xb8] sm:$0xff]
    %v76 = vld [vmem:[#allocation7 + $0xc0] sm:$0xff]
    %v77 = vld [vmem:[#allocation7 + $0xc8] sm:$0xff]
    %v78 = vld [vmem:[#allocation7 + $0xd0] sm:$0xff]
    %v79 = vld [vmem:[#allocation7 + $0xd8] sm:$0xff]
    %v80 = vld [vmem:[#allocation7 + $0xe0] sm:$0xff]
    %v81 = vld [vmem:[#allocation7 + $0xe8] sm:$0xff]
    %v82 = vld [vmem:[#allocation7 + $0xf0] sm:$0xff]
    %v83 = vld [vmem:[#allocation7 + $0xf8] sm:$0xff]
    %v84 = vld [vmem:[#allocation7 + $0x100] sm:$0xff]
    %v85 = vld [vmem:[#allocation7 + $0x108] sm:$0xff]
    %v86 = vld [vmem:[#allocation7 + $0x110] sm:$0xff]
    %v87 = vld [vmem:[#allocation7 + $0x118] sm:$0xff]
    %v88 = vld [vmem:[#allocation7 + $0x120] sm:$0xff]
    %v89 = vld [vmem:[#allocation7 + $0x128] sm:$0xff]
    %v90 = vld [vmem:[#allocation7 + $0x130] sm:$0xff]
    %v91 = vld [vmem:[#allocation7 + $0x138] sm:$0xff]
    %v92 = vld [vmem:[#allocation7 + $0x140] sm:$0xff]
    %v93 = vld [vmem:[#allocation7 + $0x148] sm:$0xff]
    %v94 = vld [vmem:[#allocation7 + $0x150] sm:$0xff]
    %v95 = vld [vmem:[#allocation7 + $0x158] sm:$0xff]
    %v96 = vld [vmem:[#allocation7 + $0x160] sm:$0xff]
    %v97 = vld [vmem:[#allocation7 + $0x168] sm:$0xff]
    %v98 = vld [vmem:[#allocation7 + $0x170] sm:$0xff]
    %v99 = vld [vmem:[#allocation7 + $0x178] sm:$0xff]
    %v100 = vld [vmem:[#allocation7 + $0x180] sm:$0xff]
    %v101 = vld [vmem:[#allocation7 + $0x188] sm:$0xff]
    %v102 = vld [vmem:[#allocation7 + $0x190] sm:$0xff]
    %v103 = vld [vmem:[#allocation7 + $0x198] sm:$0xff]
    %v104 = vld [vmem:[#allocation7 + $0x1a0] sm:$0xff]
    %v105 = vld [vmem:[#allocation7 + $0x1a8] sm:$0xff]
    %v106 = vld [vmem:[#allocation7 + $0x1b0] sm:$0xff]
    %v107 = vld [vmem:[#allocation7 + $0x1b8] sm:$0xff]
    %v108 = vld [vmem:[#allocation7 + $0x1c0] sm:$0xff]
    %v109 = vld [vmem:[#allocation7 + $0x1c8] sm:$0xff]
    %v110 = vld [vmem:[#allocation7 + $0x1d0] sm:$0xff]
    %v111 = vld [vmem:[#allocation7 + $0x1d8] sm:$0xff]
    %v112 = vld [vmem:[#allocation7 + $0x1e0] sm:$0xff]
    %v113 = vld [vmem:[#allocation7 + $0x1e8] sm:$0xff]
    %v114 = vld [vmem:[#allocation7 + $0x1f0] sm:$0xff]
    %v115 = vld [vmem:[#allocation7 + $0x1f8] sm:$0xff]
    %v180 = vunpack.c.l.b16 %v52
    %v181 = vunpack.c.h.b16 %v52
    %v182 = vunpack.c.l.b16 %v53
    %v183 = vunpack.c.h.b16 %v53
    %v184 = vunpack.c.l.b16 %v54
    %v185 = vunpack.c.h.b16 %v54
    %v186 = vunpack.c.l.b16 %v55
    %v187 = vunpack.c.h.b16 %v55
    %v188 = vunpack.c.l.b16 %v56
    %v189 = vunpack.c.h.b16 %v56
    %v190 = vunpack.c.l.b16 %v57
    %v191 = vunpack.c.h.b16 %v57
    %v192 = vunpack.c.l.b16 %v58
    %v193 = vunpack.c.h.b16 %v58
    %v194 = vunpack.c.l.b16 %v59
    %v195 = vunpack.c.h.b16 %v59
    %v196 = vunpack.c.l.b16 %v60
    %v197 = vunpack.c.h.b16 %v60
    %v198 = vunpack.c.l.b16 %v61
    %v199 = vunpack.c.h.b16 %v61
    %v200 = vunpack.c.l.b16 %v62
    %v201 = vunpack.c.h.b16 %v62
    %v202 = vunpack.c.l.b16 %v63
    %v203 = vunpack.c.h.b16 %v63
    %v204 = vunpack.c.l.b16 %v64
    %v205 = vunpack.c.h.b16 %v64
    %v206 = vunpack.c.l.b16 %v65
    %v207 = vunpack.c.h.b16 %v65
    %v208 = vunpack.c.l.b16 %v66
    %v209 = vunpack.c.h.b16 %v66
    %v210 = vunpack.c.l.b16 %v67
    %v211 = vunpack.c.h.b16 %v67
    %v212 = vunpack.c.l.b16 %v68
    %v213 = vunpack.c.h.b16 %v68
    %v214 = vunpack.c.l.b16 %v69
    %v215 = vunpack.c.h.b16 %v69
    %v216 = vunpack.c.l.b16 %v70
    %v217 = vunpack.c.h.b16 %v70
    %v218 = vunpack.c.l.b16 %v71
    %v219 = vunpack.c.h.b16 %v71
    %v220 = vunpack.c.l.b16 %v72
    %v221 = vunpack.c.h.b16 %v72
    %v222 = vunpack.c.l.b16 %v73
    %v223 = vunpack.c.h.b16 %v73
    %v224 = vunpack.c.l.b16 %v74
    %v225 = vunpack.c.h.b16 %v74
    %v226 = vunpack.c.l.b16 %v75
    %v227 = vunpack.c.h.b16 %v75
    %v228 = vunpack.c.l.b16 %v76
    %v229 = vunpack.c.h.b16 %v76
    %v230 = vunpack.c.l.b16 %v77
    %v231 = vunpack.c.h.b16 %v77
    %v232 = vunpack.c.l.b16 %v78
    %v233 = vunpack.c.h.b16 %v78
    %v234 = vunpack.c.l.b16 %v79
    %v235 = vunpack.c.h.b16 %v79
    %v236 = vunpack.c.l.b16 %v80
    %v237 = vunpack.c.h.b16 %v80
    %v238 = vunpack.c.l.b16 %v81
    %v239 = vunpack.c.h.b16 %v81
    %v240 = vunpack.c.l.b16 %v82
    %v241 = vunpack.c.h.b16 %v82
    %v242 = vunpack.c.l.b16 %v83
    %v243 = vunpack.c.h.b16 %v83
    %v244 = vunpack.c.l.b16 %v84
    %v245 = vunpack.c.h.b16 %v84
    %v246 = vunpack.c.l.b16 %v85
    %v247 = vunpack.c.h.b16 %v85
    %v248 = vunpack.c.l.b16 %v86
    %v249 = vunpack.c.h.b16 %v86
    %v250 = vunpack.c.l.b16 %v87
    %v251 = vunpack.c.h.b16 %v87
    %v252 = vunpack.c.l.b16 %v88
    %v253 = vunpack.c.h.b16 %v88
    %v254 = vunpack.c.l.b16 %v89
    %v255 = vunpack.c.h.b16 %v89
    %v256 = vunpack.c.l.b16 %v90
    %v257 = vunpack.c.h.b16 %v90
    %v258 = vunpack.c.l.b16 %v91
    %v259 = vunpack.c.h.b16 %v91
    %v260 = vunpack.c.l.b16 %v92
    %v261 = vunpack.c.h.b16 %v92
    %v262 = vunpack.c.l.b16 %v93
    %v263 = vunpack.c.h.b16 %v93
    %v264 = vunpack.c.l.b16 %v94
    %v265 = vunpack.c.h.b16 %v94
    %v266 = vunpack.c.l.b16 %v95
    %v267 = vunpack.c.h.b16 %v95
    %v268 = vunpack.c.l.b16 %v96
    %v269 = vunpack.c.h.b16 %v96
    %v270 = vunpack.c.l.b16 %v97
    %v271 = vunpack.c.h.b16 %v97
    %v272 = vunpack.c.l.b16 %v98
    %v273 = vunpack.c.h.b16 %v98
    %v274 = vunpack.c.l.b16 %v99
    %v275 = vunpack.c.h.b16 %v99
    %v276 = vunpack.c.l.b16 %v100
    %v277 = vunpack.c.h.b16 %v100
    %v278 = vunpack.c.l.b16 %v101
    %v279 = vunpack.c.h.b16 %v101
    %v280 = vunpack.c.l.b16 %v102
    %v281 = vunpack.c.h.b16 %v102
    %v282 = vunpack.c.l.b16 %v103
    %v283 = vunpack.c.h.b16 %v103
    %v284 = vunpack.c.l.b16 %v104
    %v285 = vunpack.c.h.b16 %v104
    %v286 = vunpack.c.l.b16 %v105
    %v287 = vunpack.c.h.b16 %v105
    %v288 = vunpack.c.l.b16 %v106
    %v289 = vunpack.c.h.b16 %v106
    %v290 = vunpack.c.l.b16 %v107
    %v291 = vunpack.c.h.b16 %v107
    %v292 = vunpack.c.l.b16 %v108
    %v293 = vunpack.c.h.b16 %v108
    %v294 = vunpack.c.l.b16 %v109
    %v295 = vunpack.c.h.b16 %v109
    %v296 = vunpack.c.l.b16 %v110
    %v297 = vunpack.c.h.b16 %v110
    %v298 = vunpack.c.l.b16 %v111
    %v299 = vunpack.c.h.b16 %v111
    %v300 = vunpack.c.l.b16 %v112
    %v301 = vunpack.c.h.b16 %v112
    %v302 = vunpack.c.l.b16 %v113
    %v303 = vunpack.c.h.b16 %v113
    %v304 = vunpack.c.l.b16 %v114
    %v305 = vunpack.c.h.b16 %v114
    %v306 = vunpack.c.l.b16 %v115
    %v307 = vunpack.c.h.b16 %v115
    %v308 = vpack.c.b16 %v188, %v180
    %v309 = vpack.c.b16 %v189, %v181
    %v310 = vpack.c.b16 %v190, %v182
    %v311 = vpack.c.b16 %v191, %v183
    %v312 = vpack.c.b16 %v192, %v184
    %v313 = vpack.c.b16 %v193, %v185
    %v314 = vpack.c.b16 %v194, %v186
    %v315 = vpack.c.b16 %v195, %v187
    %v316 = vpack.c.b16 %v204, %v196
    %v317 = vpack.c.b16 %v205, %v197
    %v318 = vpack.c.b16 %v206, %v198
    %v319 = vpack.c.b16 %v207, %v199
    %v320 = vpack.c.b16 %v208, %v200
    %v321 = vpack.c.b16 %v209, %v201
    %v322 = vpack.c.b16 %v210, %v202
    %v323 = vpack.c.b16 %v211, %v203
    %v324 = vpack.c.b16 %v220, %v212
    %v325 = vpack.c.b16 %v221, %v213
    %v326 = vpack.c.b16 %v222, %v214
    %v327 = vpack.c.b16 %v223, %v215
    %v328 = vpack.c.b16 %v224, %v216
    %v329 = vpack.c.b16 %v225, %v217
    %v330 = vpack.c.b16 %v226, %v218
    %v331 = vpack.c.b16 %v227, %v219
    %v332 = vpack.c.b16 %v236, %v228
    %v333 = vpack.c.b16 %v237, %v229
    %v334 = vpack.c.b16 %v238, %v230
    %v335 = vpack.c.b16 %v239, %v231
    %v336 = vpack.c.b16 %v240, %v232
    %v337 = vpack.c.b16 %v241, %v233
    %v338 = vpack.c.b16 %v242, %v234
    %v339 = vpack.c.b16 %v243, %v235
    %v340 = vpack.c.b16 %v252, %v244
    %v341 = vpack.c.b16 %v253, %v245
    %v342 = vpack.c.b16 %v254, %v246
    %v343 = vpack.c.b16 %v255, %v247
    %v344 = vpack.c.b16 %v256, %v248
    %v345 = vpack.c.b16 %v257, %v249
    %v346 = vpack.c.b16 %v258, %v250
    %v347 = vpack.c.b16 %v259, %v251
    %v348 = vpack.c.b16 %v268, %v260
    %v349 = vpack.c.b16 %v269, %v261
    %v350 = vpack.c.b16 %v270, %v262
    %v351 = vpack.c.b16 %v271, %v263
    %v352 = vpack.c.b16 %v272, %v264
    %v353 = vpack.c.b16 %v273, %v265
    %v354 = vpack.c.b16 %v274, %v266
    %v355 = vpack.c.b16 %v275, %v267
    %v356 = vpack.c.b16 %v284, %v276
    %v357 = vpack.c.b16 %v285, %v277
    %v358 = vpack.c.b16 %v286, %v278
    %v359 = vpack.c.b16 %v287, %v279
    %v360 = vpack.c.b16 %v288, %v280
    %v361 = vpack.c.b16 %v289, %v281
    %v362 = vpack.c.b16 %v290, %v282
    %v363 = vpack.c.b16 %v291, %v283
    %v364 = vpack.c.b16 %v300, %v292
    %v365 = vpack.c.b16 %v301, %v293
    %v366 = vpack.c.b16 %v302, %v294
    %v367 = vpack.c.b16 %v303, %v295
    %v368 = vpack.c.b16 %v304, %v296
    %v369 = vpack.c.b16 %v305, %v297
    %v370 = vpack.c.b16 %v306, %v298
    %v371 = vpack.c.b16 %v307, %v299
    %436 = vmatprep.subr.bf16.mxu0 %v365
    %437 = vmatpush1.bf16.msra.mxu0 %v364
    %438 = vmatprep.subr.bf16.mxu0 %v357
    %439 = vmatpush1.bf16.msra.mxu0 %v356
    %440 = vmatprep.subr.bf16.mxu0 %v349
    %441 = vmatpush1.bf16.msra.mxu0 %v348
    %442 = vmatprep.subr.bf16.mxu0 %v341
    %443 = vmatpush1.bf16.msra.mxu0 %v340
    %444 = vmatprep.subr.bf16.mxu0 %v333
    %445 = vmatpush1.bf16.msra.mxu0 %v332
    %446 = vmatprep.subr.bf16.mxu0 %v325
    %447 = vmatpush1.bf16.msra.mxu0 %v324
    %448 = vmatprep.subr.bf16.mxu0 %v317
    %449 = vmatpush1.bf16.msra.mxu0 %v316
    %450 = vmatprep.subr.bf16.mxu0 %v309
    %451 = vmatpush1.bf16.msra.mxu0 %v308
    %452 = vmatprep.subr.bf16.mxu0 0
    %453 = vmatpush2.bf16.msra.mxu0 0
    %454 = vmatprep.subr.bf16.mxu0 0
    %455 = vmatpush2.bf16.msra.mxu0 0
    %456 = vmatprep.subr.bf16.mxu0 0
    %457 = vmatpush2.bf16.msra.mxu0 0
    %458 = vmatprep.subr.bf16.mxu0 0
    %459 = vmatpush2.bf16.msra.mxu0 0
    %460 = vmatprep.subr.bf16.mxu0 0
    %461 = vmatpush2.bf16.msra.mxu0 0
    %462 = vmatprep.subr.bf16.mxu0 0
    %463 = vmatpush2.bf16.msra.mxu0 0
    %464 = vmatprep.subr.bf16.mxu0 0
    %465 = vmatpush2.bf16.msra.mxu0 0
    %466 = vmatprep.subr.bf16.mxu0 0
    %467 = vmatpush2.bf16.msra.mxu0 0
    %468 = vmatprep.mubr.bf16.mxu0 0
    %469 = vmatmul.mubr.bf16.gmra.mxu0 %v51
    %v470 = vpop.f32.mrf.mxu0
    %v471 = vadd.f32 0.0, %v470
    %v472 = vpop.f32.mrf.mxu0
    %v473 = vadd.f32 0.0, %v472
    %v474 = vpop.f32.mrf.mxu0
    %v475 = vpop.f32.mrf.mxu0
    %476 = vdwg.mxu0
    %477 = vmatprep.subr.bf16.mxu0 %v367
    %478 = vmatpush1.bf16.msra.mxu0 %v366
    %479 = vmatprep.subr.bf16.mxu0 %v359
    %480 = vmatpush1.bf16.msra.mxu0 %v358
    %481 = vmatprep.subr.bf16.mxu0 %v351
    %482 = vmatpush1.bf16.msra.mxu0 %v350
    %483 = vmatprep.subr.bf16.mxu0 %v343
    %484 = vmatpush1.bf16.msra.mxu0 %v342
    %485 = vmatprep.subr.bf16.mxu0 %v335
    %486 = vmatpush1.bf16.msra.mxu0 %v334
    %487 = vmatprep.subr.bf16.mxu0 %v327
    %488 = vmatpush1.bf16.msra.mxu0 %v326
    %489 = vmatprep.subr.bf16.mxu0 %v319
    %490 = vmatpush1.bf16.msra.mxu0 %v318
    %491 = vmatprep.subr.bf16.mxu0 %v311
    %492 = vmatpush1.bf16.msra.mxu0 %v310
    %493 = vmatprep.subr.bf16.mxu0 0
    %494 = vmatpush2.bf16.msra.mxu0 0
    %495 = vmatprep.subr.bf16.mxu0 0
    %496 = vmatpush2.bf16.msra.mxu0 0
    %497 = vmatprep.subr.bf16.mxu0 0
    %498 = vmatpush2.bf16.msra.mxu0 0
    %499 = vmatprep.subr.bf16.mxu0 0
    %500 = vmatpush2.bf16.msra.mxu0 0
    %501 = vmatprep.subr.bf16.mxu0 0
    %502 = vmatpush2.bf16.msra.mxu0 0
    %503 = vmatprep.subr.bf16.mxu0 0
    %504 = vmatpush2.bf16.msra.mxu0 0
    %505 = vmatprep.subr.bf16.mxu0 0
    %506 = vmatpush2.bf16.msra.mxu0 0
    %507 = vmatprep.subr.bf16.mxu0 0
    %508 = vmatpush2.bf16.msra.mxu0 0
    %509 = vmatprep.mubr.bf16.mxu0 0
    %510 = vmatmul.mubr.bf16.gmra.mxu0 %v51
    %v511 = vpop.f32.mrf.mxu0
    %v512 = vadd.f32 0.0, %v511
    %v513 = vpop.f32.mrf.mxu0
    %v514 = vadd.f32 0.0, %v513
    %v515 = vpop.f32.mrf.mxu0
    %v516 = vpop.f32.mrf.mxu0
    %517 = vdwg.mxu0
    %518 = vmatprep.subr.bf16.mxu0 %v369
    %519 = vmatpush1.bf16.msra.mxu0 %v368
    %520 = vmatprep.subr.bf16.mxu0 %v361
    %521 = vmatpush1.bf16.msra.mxu0 %v360
    %522 = vmatprep.subr.bf16.mxu0 %v353
    %523 = vmatpush1.bf16.msra.mxu0 %v352
    %524 = vmatprep.subr.bf16.mxu0 %v345
    %525 = vmatpush1.bf16.msra.mxu0 %v344
    %526 = vmatprep.subr.bf16.mxu0 %v337
    %527 = vmatpush1.bf16.msra.mxu0 %v336
    %528 = vmatprep.subr.bf16.mxu0 %v329
    %529 = vmatpush1.bf16.msra.mxu0 %v328
    %530 = vmatprep.subr.bf16.mxu0 %v321
    %531 = vmatpush1.bf16.msra.mxu0 %v320
    %532 = vmatprep.subr.bf16.mxu0 %v313
    %533 = vmatpush1.bf16.msra.mxu0 %v312
    %534 = vmatprep.subr.bf16.mxu0 0
    %535 = vmatpush2.bf16.msra.mxu0 0
    %536 = vmatprep.subr.bf16.mxu0 0
    %537 = vmatpush2.bf16.msra.mxu0 0
    %538 = vmatprep.subr.bf16.mxu0 0
    %539 = vmatpush2.bf16.msra.mxu0 0
    %540 = vmatprep.subr.bf16.mxu0 0
    %541 = vmatpush2.bf16.msra.mxu0 0
    %542 = vmatprep.subr.bf16.mxu0 0
    %543 = vmatpush2.bf16.msra.mxu0 0
    %544 = vmatprep.subr.bf16.mxu0 0
    %545 = vmatpush2.bf16.msra.mxu0 0
    %546 = vmatprep.subr.bf16.mxu0 0
    %547 = vmatpush2.bf16.msra.mxu0 0
    %548 = vmatprep.subr.bf16.mxu0 0
    %549 = vmatpush2.bf16.msra.mxu0 0
    %550 = vmatprep.mubr.bf16.mxu0 0
    %551 = vmatmul.mubr.bf16.gmra.mxu0 %v51
    %v552 = vpop.f32.mrf.mxu0
    %v553 = vadd.f32 0.0, %v552
    %v554 = vpop.f32.mrf.mxu0
    %v555 = vadd.f32 0.0, %v554
    %v556 = vpop.f32.mrf.mxu0
    %v557 = vpop.f32.mrf.mxu0
    %558 = vdwg.mxu0
    %559 = vmatprep.subr.bf16.mxu0 %v371
    %560 = vmatpush1.bf16.msra.mxu0 %v370
    %561 = vmatprep.subr.bf16.mxu0 %v363
    %562 = vmatpush1.bf16.msra.mxu0 %v362
    %563 = vmatprep.subr.bf16.mxu0 %v355
    %564 = vmatpush1.bf16.msra.mxu0 %v354
    %565 = vmatprep.subr.bf16.mxu0 %v347
    %566 = vmatpush1.bf16.msra.mxu0 %v346
    %567 = vmatprep.subr.bf16.mxu0 %v339
    %568 = vmatpush1.bf16.msra.mxu0 %v338
    %569 = vmatprep.subr.bf16.mxu0 %v331
    %570 = vmatpush1.bf16.msra.mxu0 %v330
    %571 = vmatprep.subr.bf16.mxu0 %v323
    %572 = vmatpush1.bf16.msra.mxu0 %v322
    %573 = vmatprep.subr.bf16.mxu0 %v315
    %574 = vmatpush1.bf16.msra.mxu0 %v314
    %575 = vmatprep.subr.bf16.mxu0 0
    %576 = vmatpush2.bf16.msra.mxu0 0
    %577 = vmatprep.subr.bf16.mxu0 0
    %578 = vmatpush2.bf16.msra.mxu0 0
    %579 = vmatprep.subr.bf16.mxu0 0
    %580 = vmatpush2.bf16.msra.mxu0 0
    %581 = vmatprep.subr.bf16.mxu0 0
    %582 = vmatpush2.bf16.msra.mxu0 0
    %583 = vmatprep.subr.bf16.mxu0 0
    %584 = vmatpush2.bf16.msra.mxu0 0
    %585 = vmatprep.subr.bf16.mxu0 0
    %586 = vmatpush2.bf16.msra.mxu0 0
    %587 = vmatprep.subr.bf16.mxu0 0
    %588 = vmatpush2.bf16.msra.mxu0 0
    %589 = vmatprep.subr.bf16.mxu0 0
    %590 = vmatpush2.bf16.msra.mxu0 0
    %591 = vmatprep.mubr.bf16.mxu0 0
    %592 = vmatmul.mubr.bf16.gmra.mxu0 %v51
    %v593 = vpop.f32.mrf.mxu0
    %v594 = vadd.f32 0.0, %v593
    %v595 = vpop.f32.mrf.mxu0
    %v596 = vadd.f32 0.0, %v595
    %v597 = vpop.f32.mrf.mxu0
    %v598 = vpop.f32.mrf.mxu0
    %599 = vdwg.mxu0
    %s600 = sadd.s32 0, 0
    %v601 = vlaneseq
    %v602 = vand.u32 %v601, 127
    %v603 = vadd.s32 %v602, 128
    %v604 = vadd.s32 %v602, 256
    %v605 = vadd.s32 %v602, 384
    %v606 = vadd.s32 %v602, 512
    %v607 = vadd.s32 %v602, 640
    %v608 = vadd.s32 %v602, 768
    %v609 = vadd.s32 %v602, 896
    %s610 = smul.u32 %s600, 1024
    %v611 = vstv %s610
    %v612 = vadd.s32 %v602, %v611
    %v613 = vadd.s32 %v603, %v611
    %v614 = vadd.s32 %v604, %v611
    %v615 = vadd.s32 %v605, %v611
    %v616 = vadd.s32 %v606, %v611
    %v617 = vadd.s32 %v607, %v611
    %v618 = vadd.s32 %v608, %v611
    %v619 = vadd.s32 %v609, %v611
    %vm620 = vcmp.lt.s32.totalorder %v612, 1000
    %vm621 = vcmp.lt.s32.totalorder %v613, 1000
    %vm622 = vcmp.lt.s32.totalorder %v614, 1000
    %vm623 = vcmp.lt.s32.totalorder %v615, 1000
    %vm624 = vcmp.lt.s32.totalorder %v616, 1000
    %vm625 = vcmp.lt.s32.totalorder %v617, 1000
    %vm626 = vcmp.lt.s32.totalorder %v618, 1000
    %vm627 = vcmp.lt.s32.totalorder %v619, 1000
    %v628 = vsel %vm620, %v471, -inf
    %v629 = vsel %vm621, %v473, -inf
    %v630 = vsel %vm622, %v512, -inf
    %v631 = vsel %vm623, %v514, -inf
    %v632 = vsel %vm624, %v553, -inf
    %v633 = vsel %vm625, %v555, -inf
    %v634 = vsel %vm626, %v594, -inf
    %v635 = vsel %vm627, %v596, -inf
    %636 = vst [vmem:[#allocation9] sm:$0xff] %v628
    %637 = vst [vmem:[#allocation9 + $0x8] sm:$0xff] %v629
    %638 = vst [vmem:[#allocation9 + $0x10] sm:$0xff] %v630
    %639 = vst [vmem:[#allocation9 + $0x18] sm:$0xff] %v631
    %640 = vst [vmem:[#allocation9 + $0x20] sm:$0xff] %v632
    %641 = vst [vmem:[#allocation9 + $0x28] sm:$0xff] %v633
    %642 = vst [vmem:[#allocation9 + $0x30] sm:$0xff] %v634
    %643 = vst [vmem:[#allocation9 + $0x38] sm:$0xff] %v635
    %p644 = scmp.eq.s32.totalorder 0, 0
    // Predicated region
    $region18: #{prodname_similarity_argmax.1} parent=1 // pred_check
      %p645 = pneg %p644
    $region19: #{prodname_similarity_argmax.1} parent=1 // pred_check_branch
      %647 = sbr.rel (%p645) target = $region21
    $region20: #{prodname_similarity_argmax.1} parent=1 // pred_region
      %648 = vst [vmem:[#allocation2] sm:$0xff] %v628
      %649 = vst [vmem:[#allocation2 + $0x8] sm:$0xff] %v629
      %650 = vst [vmem:[#allocation2 + $0x10] sm:$0xff] %v630
      %651 = vst [vmem:[#allocation2 + $0x18] sm:$0xff] %v631
      %652 = vst [vmem:[#allocation2 + $0x20] sm:$0xff] %v632
      %653 = vst [vmem:[#allocation2 + $0x28] sm:$0xff] %v633
      %654 = vst [vmem:[#allocation2 + $0x30] sm:$0xff] %v634
      %655 = vst [vmem:[#allocation2 + $0x38] sm:$0xff] %v635
      %656 = vst [vmem:[#allocation3] sm:$0xff] %v612
      %657 = vst [vmem:[#allocation3 + $0x8] sm:$0xff] %v613
      %658 = vst [vmem:[#allocation3 + $0x10] sm:$0xff] %v614
      %659 = vst [vmem:[#allocation3 + $0x18] sm:$0xff] %v615
      %660 = vst [vmem:[#allocation3 + $0x20] sm:$0xff] %v616
      %661 = vst [vmem:[#allocation3 + $0x28] sm:$0xff] %v617
      %662 = vst [vmem:[#allocation3 + $0x30] sm:$0xff] %v618
      %663 = vst [vmem:[#allocation3 + $0x38] sm:$0xff] %v619
    $region21: #{prodname_similarity_argmax.1} parent=1 // pred_fallthru
      _
    %p664 = scmp.gt.s32.totalorder 0, 0
    // Predicated region
    $region22: #{prodname_similarity_argmax.1} parent=1 // pred_check
      %p665 = pneg %p664
    $region23: #{prodname_similarity_argmax.1} parent=1 // pred_check_branch
      %667 = sbr.rel (%p665) target = $region25
    $region24: #{prodname_similarity_argmax.1} parent=1 // pred_region
      %v668 = vld [vmem:[#allocation2] sm:$0xff]
      %v669 = vld [vmem:[#allocation2 + $0x8] sm:$0xff]
      %v670 = vld [vmem:[#allocation2 + $0x10] sm:$0xff]
      %v671 = vld [vmem:[#allocation2 + $0x18] sm:$0xff]
      %v672 = vld [vmem:[#allocation2 + $0x20] sm:$0xff]
      %v673 = vld [vmem:[#allocation2 + $0x28] sm:$0xff]
      %v674 = vld [vmem:[#allocation2 + $0x30] sm:$0xff]
      %v675 = vld [vmem:[#allocation2 + $0x38] sm:$0xff]
      %vm676 = vcmp.gt.f32.partialorder %v628, %v668
      %vm677 = vcmp.gt.f32.partialorder %v629, %v669
      %vm678 = vcmp.gt.f32.partialorder %v630, %v670
      %vm679 = vcmp.gt.f32.partialorder %v631, %v671
      %vm680 = vcmp.gt.f32.partialorder %v632, %v672
      %vm681 = vcmp.gt.f32.partialorder %v633, %v673
      %vm682 = vcmp.gt.f32.partialorder %v634, %v674
      %vm683 = vcmp.gt.f32.partialorder %v635, %v675
      %v684 = vld [vmem:[#allocation3] sm:$0xff]
      %v685 = vld [vmem:[#allocation3 + $0x8] sm:$0xff]
      %v686 = vld [vmem:[#allocation3 + $0x10] sm:$0xff]
      %v687 = vld [vmem:[#allocation3 + $0x18] sm:$0xff]
      %v688 = vld [vmem:[#allocation3 + $0x20] sm:$0xff]
      %v689 = vld [vmem:[#allocation3 + $0x28] sm:$0xff]
      %v690 = vld [vmem:[#allocation3 + $0x30] sm:$0xff]
      %v691 = vld [vmem:[#allocation3 + $0x38] sm:$0xff]
      %v692 = vsel %vm676, %v612, %v684
      %v693 = vsel %vm677, %v613, %v685
      %v694 = vsel %vm678, %v614, %v686
      %v695 = vsel %vm679, %v615, %v687
      %v696 = vsel %vm680, %v616, %v688
      %v697 = vsel %vm681, %v617, %v689
      %v698 = vsel %vm682, %v618, %v690
      %v699 = vsel %vm683, %v619, %v691
      %700 = vst [vmem:[#allocation3] sm:$0xff] %v692
      %701 = vst [vmem:[#allocation3 + $0x8] sm:$0xff] %v693
      %702 = vst [vmem:[#allocation3 + $0x10] sm:$0xff] %v694
      %703 = vst [vmem:[#allocation3 + $0x18] sm:$0xff] %v695
      %704 = vst [vmem:[#allocation3 + $0x20] sm:$0xff] %v696
      %705 = vst [vmem:[#allocation3 + $0x28] sm:$0xff] %v697
      %706 = vst [vmem:[#allocation3 + $0x30] sm:$0xff] %v698
      %707 = vst [vmem:[#allocation3 + $0x38] sm:$0xff] %v699
      %v708 = vld [vmem:[#allocation2] sm:$0xff]
      %v709 = vld [vmem:[#allocation2 + $0x8] sm:$0xff]
      %v710 = vld [vmem:[#allocation2 + $0x10] sm:$0xff]
      %v711 = vld [vmem:[#allocation2 + $0x18] sm:$0xff]
      %v712 = vld [vmem:[#allocation2 + $0x20] sm:$0xff]
      %v713 = vld [vmem:[#allocation2 + $0x28] sm:$0xff]
      %v714 = vld [vmem:[#allocation2 + $0x30] sm:$0xff]
      %v715 = vld [vmem:[#allocation2 + $0x38] sm:$0xff]
      %v716 = vsel %vm676, %v628, %v708
      %v717 = vsel %vm677, %v629, %v709
      %v718 = vsel %vm678, %v630, %v710
      %v719 = vsel %vm679, %v631, %v711
      %v720 = vsel %vm680, %v632, %v712
      %v721 = vsel %vm681, %v633, %v713
      %v722 = vsel %vm682, %v634, %v714
      %v723 = vsel %vm683, %v635, %v715
      %724 = vst [vmem:[#allocation2] sm:$0xff] %v716
      %725 = vst [vmem:[#allocation2 + $0x8] sm:$0xff] %v717
      %726 = vst [vmem:[#allocation2 + $0x10] sm:$0xff] %v718
      %727 = vst [vmem:[#allocation2 + $0x18] sm:$0xff] %v719
      %728 = vst [vmem:[#allocation2 + $0x20] sm:$0xff] %v720
      %729 = vst [vmem:[#allocation2 + $0x28] sm:$0xff] %v721
      %730 = vst [vmem:[#allocation2 + $0x30] sm:$0xff] %v722
      %731 = vst [vmem:[#allocation2 + $0x38] sm:$0xff] %v723
    $region25: #{prodname_similarity_argmax.1} parent=1 // pred_fallthru
      _
    // Predicated region
    $region26: #{prodname_similarity_argmax.1} parent=1 // pred_check
      %p732 = pneg %p644
    $region27: #{prodname_similarity_argmax.1} parent=1 // pred_check_branch
      %734 = sbr.rel (%p732) target = $region29
    $region28: #{prodname_similarity_argmax.1} parent=1 // pred_region
      %v735 = vld [vmem:[#allocation2] sm:$0xff]
      %v736 = vld [vmem:[#allocation2 + $0x8] sm:$0xff]
      %v737 = vld [vmem:[#allocation2 + $0x10] sm:$0xff]
      %v738 = vld [vmem:[#allocation2 + $0x18] sm:$0xff]
      %v739 = vld [vmem:[#allocation2 + $0x20] sm:$0xff]
      %v740 = vld [vmem:[#allocation2 + $0x28] sm:$0xff]
      %v741 = vld [vmem:[#allocation2 + $0x30] sm:$0xff]
      %v742 = vld [vmem:[#allocation2 + $0x38] sm:$0xff]
      %v743 = vld [vmem:[#allocation3] sm:$0xff]
      %v744 = vld [vmem:[#allocation3 + $0x8] sm:$0xff]
      %v745 = vld [vmem:[#allocation3 + $0x10] sm:$0xff]
      %v746 = vld [vmem:[#allocation3 + $0x18] sm:$0xff]
      %v747 = vld [vmem:[#allocation3 + $0x20] sm:$0xff]
      %v748 = vld [vmem:[#allocation3 + $0x28] sm:$0xff]
      %v749 = vld [vmem:[#allocation3 + $0x30] sm:$0xff]
      %v750 = vld [vmem:[#allocation3 + $0x38] sm:$0xff]
      %v751 = vmax.f32 %v735, %v739
      %v752 = vmax.f32 %v736, %v740
      %v753 = vmax.f32 %v737, %v741
      %v754 = vmax.f32 %v738, %v742
      %v755 = vmax.f32 %v751, %v752
      %v756 = vmax.f32 %v753, %v754
      %v757 = vmax.f32 %v755, %v756
      %758 = vmax.xlane.f32.xlu0 %v757
      %v759 = vpop.xlane.xlu0 %758
      %vm760 = vcmp.eq.f32.partialorder %v735, %v759
      %vm761 = vcmp.eq.f32.partialorder %v736, %v759
      %vm762 = vcmp.eq.f32.partialorder %v737, %v759
      %vm763 = vcmp.eq.f32.partialorder %v738, %v759
      %vm764 = vcmp.eq.f32.partialorder %v739, %v759
      %vm765 = vcmp.eq.f32.partialorder %v740, %v759
      %vm766 = vcmp.eq.f32.partialorder %v741, %v759
      %vm767 = vcmp.eq.f32.partialorder %v742, %v759
      %v768 = vsel %vm760, %v743, 2147483647
      %v769 = vsel %vm761, %v744, 2147483647
      %v770 = vsel %vm762, %v745, 2147483647
      %v771 = vsel %vm763, %v746, 2147483647
      %v772 = vsel %vm764, %v747, 2147483647
      %v773 = vsel %vm765, %v748, 2147483647
      %v774 = vsel %vm766, %v749, 2147483647
      %v775 = vsel %vm767, %v750, 2147483647
      %vm776 = vcmp.lt.s32.totalorder %v768, %v772
      %v777 = vsel %vm776, %v768, %v772
      %vm778 = vcmp.lt.s32.totalorder %v769, %v773
      %v779 = vsel %vm778, %v769, %v773
      %vm780 = vcmp.lt.s32.totalorder %v770, %v774
      %v781 = vsel %vm780, %v770, %v774
      %vm782 = vcmp.lt.s32.totalorder %v771, %v775
      %v783 = vsel %vm782, %v771, %v775
      %vm784 = vcmp.lt.s32.totalorder %v777, %v779
      %v785 = vsel %vm784, %v777, %v779
      %vm786 = vcmp.lt.s32.totalorder %v781, %v783
      %v787 = vsel %vm786, %v781, %v783
      %vm788 = vcmp.lt.s32.totalorder %v785, %v787
      %v789 = vsel %vm788, %v785, %v787
      %v790 = vand.u32 %v789, 65535
      %v791 = vshra.s32 %v789, 16
      %v792 = vcvt.s32.f32 %v790
      %v793 = vcvt.s32.f32 %v791
      %794 = vmin.xlane.f32.xlu0 %v793
      %v795 = vpop.xlane.xlu0 %794
      %vm796 = vcmp.eq.f32.partialorder %v793, %v795
      %v797 = vsel %vm796, %v792, inf
      %798 = vmin.xlane.f32.xlu0 %v797
      %v799 = vpop.xlane.xlu0 %798
      %v800 = vcvt.f32.s32 %v799
      %v801 = vcvt.f32.s32 %v795
      %v802 = vshll.u32 %v801, 16
      %v803 = vadd.s32 %v802, %v800
      %vm804 = vcmask 7168
      %805 = vst.msk [vmem:[#allocation10] sm:$0xff] %vm804, %v759
      %806 = vst.msk [vmem:[%s4] sm:$0xff] %vm804, %v803
    $region29: #{prodname_similarity_argmax.1} parent=1 // pred_fallthru
      _
    // Predicated region
    $region30: #{prodname_similarity_argmax.1} parent=1 // pred_check
      _
    $region31: #{prodname_similarity_argmax.1} parent=1 // pred_check_branch
      %808 = sbr.rel (0) target = $region33
    $region32: #{prodname_similarity_argmax.1} parent=1 // pred_region
      %s809 = sadd.s32 0, 0
      %s810 = smul.u32 8, %s809
      %s812 = ssub.s32 1024, 1024
      %813 = vsyncadd [#allocation6], %s812
      %s814 = smul.addr %s810, 128
      %s815 = scalar_lea.hbm %s2, %s814
      %s817 = sshll.u32 [#allocation9], 4
      %s818 = int_to_ptr.vmem [resolvable:$true] %s817
      %820 = dma.vmem_to_hbm [thread:$0]  %s818, 1024, %s815, [#allocation6]
    $region33: #{prodname_similarity_argmax.1} parent=1 // pred_fallthru
      _
    // Predicated region
    $region34: #{prodname_similarity_argmax.1} parent=1 // pred_check
      _
    $region35: #{prodname_similarity_argmax.1} parent=1 // pred_check_branch
      %822 = sbr.rel (0) target = $region37
    $region36: #{prodname_similarity_argmax.1} parent=1 // pred_region
      %s824 = ssub.s32 128, 128
      %825 = vsyncadd [#allocation11], %s824
      %s827 = sshll.u32 [#allocation10], 4
      %s828 = int_to_ptr.vmem [resolvable:$true] %s827
      %830 = dma.vmem_to_hbm [thread:$0]  %s828, 128, %s3, [#allocation11]
    $region37: #{prodname_similarity_argmax.1} parent=1 // pred_fallthru
      _
    // Predicated region
    $region38: #{prodname_similarity_argmax.1} parent=1 // pred_check
      _
    $region39: #{prodname_similarity_argmax.1} parent=1 // pred_check_branch
      %832 = sbr.rel (0) target = $region41
    $region40: #{prodname_similarity_argmax.1} parent=1 // pred_region
      _
    $region41: #{prodname_similarity_argmax.1} parent=1 // pred_fallthru
      _
    // Predicated region
    $region42: #{prodname_similarity_argmax.1} parent=1 // pred_check
      _
    $region43: #{prodname_similarity_argmax.1} parent=1 // pred_check_branch
      %834 = sbr.rel (0) target = $region45
    $region44: #{prodname_similarity_argmax.1} parent=1 // pred_region
      %835 = dma.done [#allocation6], 1024
    $region45: #{prodname_similarity_argmax.1} parent=1 // pred_fallthru
      _
    // Predicated region
    $region46: #{prodname_similarity_argmax.1} parent=1 // pred_check
      _
    $region47: #{prodname_similarity_argmax.1} parent=1 // pred_check_branch
      %837 = sbr.rel (0) target = $region49
    $region48: #{prodname_similarity_argmax.1} parent=1 // pred_region
      %838 = dma.done [#allocation11], 128
    $region49: #{prodname_similarity_argmax.1} parent=1 // pred_fallthru
      _
    // Predicated region
    $region50: #{prodname_similarity_argmax.1} parent=1 // pred_check
      _
    $region51: #{prodname_similarity_argmax.1} parent=1 // pred_check_branch
      %840 = sbr.rel (0) target = $region53
    $region52: #{prodname_similarity_argmax.1} parent=1 // pred_region
      _
    $region53: #{prodname_similarity_argmax.1} parent=1 // pred_fallthru
      _
    %841 = vsyncpa [#allocation5], 1
    %842 = vsyncpa [#allocation8], 1
    %843 = vsyncpa [#allocation6], 1
    %844 = vsyncpa [#allocation11], 1

</llo_original>
